<compile_context>
chip_gen: v6e
topology: v6e:2x2x1
jax: 0.10.0
libtpu: 0.0.40
codegen_flags: <defaults>
</compile_context>

<pallas_src>
import functools
import numpy as np

import jax
import jax.numpy as jnp
from jax.experimental import pallas as pl
from jax.experimental.pallas import tpu as pltpu


# ----------------------------------------------------------------------------
# Tiling constants / helpers
# ----------------------------------------------------------------------------
_LANE = 128
_SUBLANE_MIN = 8
_VMEM_LIMIT_BYTES = 48 * 1024 * 1024   # explicit scoped-VMEM limit (safe on v7x/v6e/v5e)
_VMEM_BUDGET_BYTES = 32 * 1024 * 1024  # target for double-buffered blocks (2 x 16 MiB)

_COMPILER_PARAMS = pltpu.CompilerParams(
    dimension_semantics=("parallel",),
    vmem_limit_bytes=_VMEM_LIMIT_BYTES,
)


def _sublane_quantum(*dtypes) -> int:
    """Row quantum so sub-32-bit dtypes fully pack their vregs (8/16/32 rows)."""
    min_itemsize = min(jnp.dtype(d).itemsize for d in dtypes)
    return max(_SUBLANE_MIN, 32 // max(1, min_itemsize))


def _pick_lane_width(total: int):
    """Factor `total` into (rows, lane) with lane a multiple of 128, or None."""
    if total <= 0 or total % _LANE != 0:
        return None
    for lane in (4096, 2048, 1024, 512, 256, 128):
        if total % lane == 0:
            return total // lane, lane
    return None  # unreachable (128 always divides total here)


def _pick_row_block(rows: int, bytes_per_row: int, quantum: int) -> int:
    """Largest row block dividing `rows` that fits the per-step VMEM budget.

    Single step if everything fits; otherwise a multiple-of-`quantum` divisor
    within budget, preferring an even number of grid steps (v7x megacore).
    """
    per_step_budget = _VMEM_BUDGET_BYTES // 2  # double-buffered pipeline
    max_rows = max(1, per_step_budget // max(1, bytes_per_row))
    if rows <= max_rows:
        return rows  # whole slab in one step (no forced split on 1-TC parts)

    def _scan(step):
        d = (max_rows // step) * step
        while d >= step:
            if rows % d == 0:
                return d
            d -= step
        return None

    best = _scan(quantum) or _scan(_SUBLANE_MIN)
    if best is None:
        # TODO(synk): no 8-multiple divisor fits the budget (pathological shape);
        # use the full extent and rely on the raised vmem_limit_bytes.
        return rows

    if (rows // best) % 2 != 0:  # prefer an even step count if nearly as large
        d = best - quantum
        while d >= quantum and 2 * d >= best:
            if rows % d == 0 and (rows // d) % 2 == 0:
                best = d
                break
            d -= quantum
    return best


# ----------------------------------------------------------------------------
# Pallas kernels (dtype promotion + output cast happen in-register, in VMEM)
# ----------------------------------------------------------------------------
def _ewise_kernel(x_ref, y_ref, o_ref, *, mode):
    x = x_ref[...]
    y = y_ref[...]
    r = x + y if mode == "add" else x * y
    o_ref[...] = r.astype(o_ref.dtype)


def _ewise_fused_kernel(x_ref, o_ref, *, mode, fn):
    x = x_ref[...]
    y = fn(x)  # branch evaluated on-chip: y never touches HBM
    r = x + y if mode == "add" else x * y
    o_ref[...] = r.astype(o_ref.dtype)


def _cat_kernel(x_ref, y_ref, o_ref, *, split):
    # split is 128-aligned -> both stores are unmasked, lane-dense vst
    o_ref[:, :split] = x_ref[...].astype(o_ref.dtype)
    o_ref[:, split:] = y_ref[...].astype(o_ref.dtype)


def _cat_fused_kernel(x_ref, o_ref, *, split, fn):
    x = x_ref[...]
    y = fn(x)
    o_ref[:, :split] = x.astype(o_ref.dtype)
    o_ref[:, split:] = y.astype(o_ref.dtype)


# ----------------------------------------------------------------------------
# pallas_call launchers (2-D lane-dense slabs, row-tiled grid)
# ----------------------------------------------------------------------------
def _launch_ewise(x2, y2, mode, out_dtype, tr):
    rows, lane = x2.shape
    return pl.pallas_call(
        functools.partial(_ewise_kernel, mode=mode),
        out_shape=jax.ShapeDtypeStruct((rows, lane), out_dtype),
        grid=(rows // tr,),
        in_specs=[pl.BlockSpec((tr, lane), lambda i: (i, 0)),
                  pl.BlockSpec((tr, lane), lambda i: (i, 0))],
        out_specs=pl.BlockSpec((tr, lane), lambda i: (i, 0)),
        compiler_params=_COMPILER_PARAMS,
    )(x2, y2)


def _launch_ewise_fused(x2, mode, out_dtype, fn, tr):
    rows, lane = x2.shape
    return pl.pallas_call(
        functools.partial(_ewise_fused_kernel, mode=mode, fn=fn),
        out_shape=jax.ShapeDtypeStruct((rows, lane), out_dtype),
        grid=(rows // tr,),
        in_specs=[pl.BlockSpec((tr, lane), lambda i: (i, 0))],
        out_specs=pl.BlockSpec((tr, lane), lambda i: (i, 0)),
        compiler_params=_COMPILER_PARAMS,
    )(x2)


def _launch_cat(x2, y2, out_dtype, tr):
    rows, lx = x2.shape
    ly = y2.shape[1]
    return pl.pallas_call(
        functools.partial(_cat_kernel, split=lx),
        out_shape=jax.ShapeDtypeStruct((rows, lx + ly), out_dtype),
        grid=(rows // tr,),
        in_specs=[pl.BlockSpec((tr, lx), lambda i: (i, 0)),
                  pl.BlockSpec((tr, ly), lambda i: (i, 0))],
        out_specs=pl.BlockSpec((tr, lx + ly), lambda i: (i, 0)),
        compiler_params=_COMPILER_PARAMS,
    )(x2, y2)


def _launch_cat_fused(x2, out_dtype, fn, tr):
    rows, lx = x2.shape
    return pl.pallas_call(
        functools.partial(_cat_fused_kernel, split=lx, fn=fn),
        out_shape=jax.ShapeDtypeStruct((rows, 2 * lx), out_dtype),
        grid=(rows // tr,),
        in_specs=[pl.BlockSpec((tr, lx), lambda i: (i, 0))],
        out_specs=pl.BlockSpec((tr, 2 * lx), lambda i: (i, 0)),
        compiler_params=_COMPILER_PARAMS,
    )(x2)


# ----------------------------------------------------------------------------
# Public wrapper: JAX/Pallas equivalent of SkipConnection(submodule, dim, mode)(x)
# ----------------------------------------------------------------------------
def skip_connection(x, submodule, dim: int = 1, mode: str = "cat",
                    *, fuse_elementwise: bool = False):
    """y = submodule(x); combine with x via 'cat' (along `dim`), 'add' or 'mul'.

    fuse_elementwise=True evaluates `submodule` on the reshaped/blocked VMEM tile,
    so it is only valid for truly pointwise callables (tanh, scaling, gelu, ...).
    # TODO(synk): axis-dependent shape-preserving branches (softmax, LayerNorm, conv)
    # pass the shape check but would be wrong under fusion — keep fuse_elementwise=False
    # for those; the branch then runs as ordinary XLA and only the combine is Pallas.
    """
    if mode not in ("cat", "add", "mul"):
        raise NotImplementedError(f"Unsupported mode {mode}.")

    if fuse_elementwise:
        y_aval = jax.eval_shape(submodule, x)
        if y_aval.shape != x.shape:
            raise ValueError("fuse_elementwise requires a shape-preserving submodule")
        y, y_shape, y_dtype = None, y_aval.shape, y_aval.dtype
    else:
        y = submodule(x)
        y_shape, y_dtype = y.shape, y.dtype

    out_dtype = jnp.result_type(x.dtype, y_dtype)
    quantum = _sublane_quantum(x.dtype, y_dtype, out_dtype)

    # ------------------------------------------------------------------ add / mul
    if mode in ("add", "mul"):
        if y_shape != x.shape:
            # TODO(synk): torch-style broadcasting between x and submodule(x) not implemented.
            raise NotImplementedError("add/mul requires submodule(x).shape == x.shape")
        total = int(np.prod(x.shape, dtype=np.int64)) if x.ndim else 1
        picked = _pick_lane_width(total)
        if picked is None:
            # TODO(synk): flat size not a multiple of 128 — no lane-dense slab without a
            # padding copy; bandwidth-bound elementwise is optimal in plain XLA anyway.
            if y is None:
                y = submodule(x)
            return (x + y) if mode == "add" else (x * y)
        rows, lane = picked
        bytes_per_row = lane * (jnp.dtype(x.dtype).itemsize
                                + jnp.dtype(y_dtype).itemsize
                                + jnp.dtype(out_dtype).itemsize)
        tr = _pick_row_block(rows, bytes_per_row, quantum)
        x2 = x.reshape(rows, lane)  # metadata-only for contiguous arrays
        if fuse_elementwise:
            out2 = _launch_ewise_fused(x2, mode, out_dtype, submodule, tr)
        else:
            out2 = _launch_ewise(x2, y.reshape(rows, lane), mode, out_dtype, tr)
        return out2.reshape(x.shape)

    # ---------------------------------------------------------------------- cat
    dim = dim % x.ndim
    if (y_shape[:dim] + y_shape[dim + 1:]) != (x.shape[:dim] + x.shape[dim + 1:]):
        raise ValueError("cat requires x and submodule(x) to match on all dims except `dim`")
    lead = int(np.prod(x.shape[:dim], dtype=np.int64)) if dim > 0 else 1
    trail = int(np.prod(x.shape[dim + 1:], dtype=np.int64)) if dim + 1 < x.ndim else 1
    cx, cy = x.shape[dim], y_shape[dim]
    lx, ly = cx * trail, cy * trail
    out_full_shape = x.shape[:dim] + (cx + cy,) + x.shape[dim + 1:]

    bytes_per_row = (lx * jnp.dtype(x.dtype).itemsize
                     + ly * jnp.dtype(y_dtype).itemsize
                     + (lx + ly) * jnp.dtype(out_dtype).itemsize)
    aligned = (lead > 0 and lx > 0 and ly > 0 and lx % _LANE == 0 and ly % _LANE == 0)
    if aligned:
        tr = _pick_row_block(lead, bytes_per_row, quantum)
        aligned = (2 * tr * bytes_per_row) <= _VMEM_LIMIT_BYTES  # double-buffered fit

    if not aligned:
        # TODO(synk): misaligned (non-128) cat split or slab too large for VMEM —
        # masked lane stores / cross-lane moves would erase any benefit; use XLA concat.
        if y is None:
            y = submodule(x)
        return jnp.concatenate([x, y], axis=dim)

    x2 = x.reshape(lead, lx)
    if fuse_elementwise:
        out2 = _launch_cat_fused(x2, out_dtype, submodule, tr)
    else:
        out2 = _launch_cat(x2, y.reshape(lead, ly), out_dtype, tr)
    return out2.reshape(out_full_shape)


# ----------------------------------------------------------------------------
# Demo / correctness check
# ----------------------------------------------------------------------------
if __name__ == "__main__":
    key = jax.random.PRNGKey(0)
    B, C, H, W = 2, 4, 16, 16
    x = jax.random.normal(key, (B, C, H, W), dtype=jnp.float32)

    # Stand-in for the trainable branch (any JAX callable works).
    submodule = lambda t: jnp.tanh(t) * 0.5

    # mode="cat" (default), dim=1
    ref_cat = jnp.concatenate([x, submodule(x)], axis=1)
    out_cat = jax.block_until_ready(skip_connection(x, submodule, dim=1, mode="cat"))
    assert out_cat.shape == (B, 2 * C, H, W) and out_cat.dtype == jnp.float32
    np.testing.assert_allclose(np.asarray(out_cat), np.asarray(ref_cat),
                               rtol=1e-5, atol=1e-5)

    # fused cat (branch evaluated inside the kernel, y never hits HBM)
    out_cat_f = jax.block_until_ready(
        skip_connection(x, submodule, dim=1, mode="cat", fuse_elementwise=True))
    np.testing.assert_allclose(np.asarray(out_cat_f), np.asarray(ref_cat),
                               rtol=1e-5, atol=1e-5)

    # add / mul: general path and on-chip-fused branch path
    for mode, op in (("add", jnp.add), ("mul", jnp.multiply)):
        ref = op(x, submodule(x))
        out = jax.block_until_ready(skip_connection(x, submodule, mode=mode))
        np.testing.assert_allclose(np.asarray(out), np.asarray(ref), rtol=1e-5, atol=1e-5)
        out_f = jax.block_until_ready(
            skip_connection(x, submodule, mode=mode, fuse_elementwise=True))
        np.testing.assert_allclose(np.asarray(out_f), np.asarray(ref), rtol=1e-5, atol=1e-5)

    # bf16 stays bf16 end to end (no forced f32 upcast anywhere)
    xb = x.astype(jnp.bfloat16)
    out_b = jax.block_until_ready(skip_connection(xb, submodule, mode="add"))
    assert out_b.dtype == jnp.bfloat16
    ref_b = jnp.add(xb, submodule(xb))
    np.testing.assert_allclose(np.asarray(out_b, dtype=np.float32),
                               np.asarray(ref_b, dtype=np.float32), rtol=1e-2, atol=1e-2)

    # mixed dtype: bf16 skip + f32 branch — promotion happens inside the kernel
    branch_f32 = lambda t: jnp.tanh(t.astype(jnp.float32)) * 0.5
    ref_m = xb + branch_f32(xb)
    out_m = jax.block_until_ready(skip_connection(xb, branch_f32, mode="add"))
    assert out_m.dtype == jnp.float32
    np.testing.assert_allclose(np.asarray(out_m), np.asarray(ref_m), rtol=1e-2, atol=1e-2)

    print("KERNEL_OK")
</pallas_src>

<mosaic_0001>
module attributes {stable_mosaic.version = 11 : i64} {
  func.func @_cat_kernel(%arg0: i32, %arg1: memref<2x1024xf32, #tpu.memory_space<vmem>>, %arg2: memref<2x1024xf32, #tpu.memory_space<vmem>>, %arg3: memref<2x2048xf32, #tpu.memory_space<vmem>>) attributes {dimension_semantics = [#tpu.dimension_semantics<parallel>], iteration_bounds = array<i64: 1>, scalar_prefetch = 0 : i64, scratch_operands = 0 : i64, tpu.core_type = #tpu.core_type<tc>, window_params = [{transform_indices = @transform_0, window_bounds = array<i64: 2, 1024>}, {transform_indices = @transform_1, window_bounds = array<i64: 2, 1024>}, {transform_indices = @transform_2, window_bounds = array<i64: 2, 2048>}]} {
    %c0 = arith.constant 0 : index
    %c0_0 = arith.constant 0 : index
    %0 = vector.load %arg1[%c0, %c0_0] : memref<2x1024xf32, #tpu.memory_space<vmem>>, vector<2x1024xf32>
    %c0_1 = arith.constant 0 : index
    %c0_2 = arith.constant 0 : index
    %1 = vector.load %arg3[%c0_1, %c0_2] : memref<2x2048xf32, #tpu.memory_space<vmem>>, vector<2x1024xf32>
    tpu.vector_store %arg3[%c0_1, %c0_2], %0 {strides = array<i32>} : memref<2x2048xf32, #tpu.memory_space<vmem>>, vector<2x1024xf32>,
    %c0_3 = arith.constant 0 : index
    %c0_4 = arith.constant 0 : index
    %2 = vector.load %arg2[%c0_3, %c0_4] : memref<2x1024xf32, #tpu.memory_space<vmem>>, vector<2x1024xf32>
    %c0_5 = arith.constant 0 : index
    %c1024 = arith.constant 1024 : index
    %3 = vector.load %arg3[%c0_5, %c1024] : memref<2x2048xf32, #tpu.memory_space<vmem>>, vector<2x1024xf32>
    tpu.vector_store %arg3[%c0_5, %c1024], %2 {strides = array<i32>} : memref<2x2048xf32, #tpu.memory_space<vmem>>, vector<2x1024xf32>,
    return
  }
  func.func @transform_0(%arg0: i32) -> (i32, i32) {
    %c0_i32 = arith.constant 0 : i32
    %c0_i32_0 = arith.constant 0 : i32
    return %arg0, %c0_i32 : i32, i32
  }
  func.func @transform_1(%arg0: i32) -> (i32, i32) {
    %c0_i32 = arith.constant 0 : i32
    %c0_i32_0 = arith.constant 0 : i32
    return %arg0, %c0_i32 : i32, i32
  }
  func.func @transform_2(%arg0: i32) -> (i32, i32) {
    %c0_i32 = arith.constant 0 : i32
    %c0_i32_0 = arith.constant 0 : i32
    return %arg0, %c0_i32 : i32, i32
  }
}

</mosaic_0001>

<llo_original>
// kernel: tpu_custom_call.1
$region0: #{tpu_custom_call.1}
  #allocation0 [shape = 'u32[]', space=smem, size = 0x4, offset = 0x4, fixed_abs, tag = 'smem constant byte address 0x4 - core index']
  #allocation1 [shape = 'u32[144,128]{1,0:T(1,128)}', space=vmem, size = 0x12000, scoped, tag = 'internal scratch']
  %s0 = inlined_call_operand.hbm [shape: f32[2,1024], index: 0, kind: input, shape index: {}]
  %s1 = inlined_call_operand.hbm [shape: f32[2,1024], index: 1, kind: input, shape index: {}]
  %s2 = inlined_call_operand.hbm [shape: f32[2,2048], index: 2, kind: output, shape index: {}]
  %s3 = sld [smem:[#allocation0]]
  $region26: #{tpu_custom_call.1} parent=0
    _
  %s5 = ssub.s32 1, %s3
  %s6 = scalar_select 0, %s5, %s3
  $region1: #{tpu_custom_call.1} parent=0
    #allocation2 [shape = 'u8[8192]{0}', space=vmem, size = 0x2000, scoped, tag = 'input window, operand 0, single buffered']
    #allocation3 [shape = 's32[1]{0}', space=sflag, size = 0x4, scoped, tag = 'scoped memory for tpu_custom_call.1']
    #allocation4 [shape = 's32[1]{0}', space=sflag, size = 0x4, scoped, tag = 'scoped memory for tpu_custom_call.1']
    #allocation5 [shape = 'u8[8192]{0}', space=vmem, size = 0x2000, scoped, tag = 'input window, operand 1, single buffered']
    #allocation6 [shape = 's32[1]{0}', space=sflag, size = 0x4, scoped, tag = 'scoped memory for tpu_custom_call.1']
    #allocation7 [shape = 'u8[16384]{0}', space=vmem, size = 0x4000, scoped, tag = 'output window, operand 0, single buffered']
    %7 = vsyncpa [#allocation3], 0
    %8 = vsyncpa [#allocation6], 0
    %9 = vsyncpa [#allocation4], 0
    // Predicated region
    $region2: #{tpu_custom_call.1} parent=1 // pred_check
      _
    $region3: #{tpu_custom_call.1} parent=1 // pred_check_branch
      %11 = sbr.rel (0) target = $region5
    $region4: #{tpu_custom_call.1} parent=1 // pred_region
      %s13 = ssub.s32 256, 256
      %14 = vsyncadd [#allocation3], %s13
      %s16 = sshll.u32 [#allocation2], 4
      %s17 = int_to_ptr.vmem [resolvable:$true] %s16
      %19 = dma.hbm_to_vmem [thread:$0]  %s0, 256, %s17, [#allocation3]
    $region5: #{tpu_custom_call.1} parent=1 // pred_fallthru
      _
    // Predicated region
    $region6: #{tpu_custom_call.1} parent=1 // pred_check
      _
    $region7: #{tpu_custom_call.1} parent=1 // pred_check_branch
      %21 = sbr.rel (0) target = $region9
    $region8: #{tpu_custom_call.1} parent=1 // pred_region
      %s23 = ssub.s32 256, 256
      %24 = vsyncadd [#allocation6], %s23
      %s26 = sshll.u32 [#allocation5], 4
      %s27 = int_to_ptr.vmem [resolvable:$true] %s26
      %29 = dma.hbm_to_vmem [thread:$0]  %s1, 256, %s27, [#allocation6]
    $region9: #{tpu_custom_call.1} parent=1 // pred_fallthru
      _
    // Predicated region
    $region10: #{tpu_custom_call.1} parent=1 // pred_check
      _
    $region11: #{tpu_custom_call.1} parent=1 // pred_check_branch
      %31 = sbr.rel (0) target = $region13
    $region12: #{tpu_custom_call.1} parent=1 // pred_region
      %32 = dma.done [#allocation3], 256
    $region13: #{tpu_custom_call.1} parent=1 // pred_fallthru
      _
    // Predicated region
    $region14: #{tpu_custom_call.1} parent=1 // pred_check
      _
    $region15: #{tpu_custom_call.1} parent=1 // pred_check_branch
      %34 = sbr.rel (0) target = $region17
    $region16: #{tpu_custom_call.1} parent=1 // pred_region
      %35 = dma.done [#allocation6], 256
    $region17: #{tpu_custom_call.1} parent=1 // pred_fallthru
      _
    %v36 = vld [vmem:[#allocation2] sm:$0xff]
    %v37 = vld [vmem:[#allocation2 + $0x8] sm:$0xff]
    %38 = vst [vmem:[#allocation7] sm:$0xff] %v36
    %39 = vst [vmem:[#allocation7 + $0x8] sm:$0xff] %v37
    %v40 = vld [vmem:[#allocation5] sm:$0xff]
    %v41 = vld [vmem:[#allocation5 + $0x8] sm:$0xff]
    %42 = vst [vmem:[#allocation7 + $0x10] sm:$0xff] %v40
    %43 = vst [vmem:[#allocation7 + $0x18] sm:$0xff] %v41
    // Predicated region
    $region18: #{tpu_custom_call.1} parent=1 // pred_check
      _
    $region19: #{tpu_custom_call.1} parent=1 // pred_check_branch
      %45 = sbr.rel (0) target = $region21
    $region20: #{tpu_custom_call.1} parent=1 // pred_region
      %s47 = ssub.s32 512, 512
      %48 = vsyncadd [#allocation4], %s47
      %s50 = sshll.u32 [#allocation7], 4
      %s51 = int_to_ptr.vmem [resolvable:$true] %s50
      %53 = dma.vmem_to_hbm [thread:$0]  %s51, 512, %s2, [#allocation4]
    $region21: #{tpu_custom_call.1} parent=1 // pred_fallthru
      _
    // Predicated region
    $region22: #{tpu_custom_call.1} parent=1 // pred_check
      _
    $region23: #{tpu_custom_call.1} parent=1 // pred_check_branch
      %55 = sbr.rel (0) target = $region25
    $region24: #{tpu_custom_call.1} parent=1 // pred_region
      %56 = dma.done [#allocation4], 512
    $region25: #{tpu_custom_call.1} parent=1 // pred_fallthru
      _
    %57 = vsyncpa [#allocation3], 1
    %58 = vsyncpa [#allocation6], 1
    %59 = vsyncpa [#allocation4], 1

</llo_original>
